<compile_context>
chip_gen: v6e
topology: v6e:2x2x1
jax: 0.10.0
libtpu: 0.0.40
codegen_flags: <defaults>
</compile_context>

<pallas_src>
import jax
import jax.numpy as jnp
from jax.experimental import pallas as pl
from jax.experimental.pallas import tpu as pltpu


def _copy_kernel(x_ref, o_ref):
    # Pure streaming copy of the current VMEM tile (identity).
    o_ref[...] = x_ref[...]


def _default_target_block_bytes() -> int:
    """Per-chip block-size target (amortize per-step overhead vs. VMEM budget)."""
    try:
        kind = jax.devices()[0].device_kind.lower()
    except Exception:  # pragma: no cover - defensive
        kind = ""
    if any(tag in kind for tag in ("v2", "v3", "v5")):
        return 1 << 20          # older / v5e: 1 MiB is ~85% of roofline, small VMEM
    if "v6" in kind:
        return 2 << 20          # v6e
    return 4 << 20              # v7x / unknown newer: faster HBM, bigger blocks


def _pick_lane_width(total: int) -> int | None:
    """Largest multiple of 128 that divides `total`, capped at 1024 lanes."""
    for k in range(8, 0, -1):   # 1024, 896, ..., 128
        lane = 128 * k
        if total % lane == 0:
            return lane
    return None


def _materialized_copy(x: jax.Array, *, donate: bool, target_block_bytes: int | None):
    """Physically fresh copy of x via a lane-dense Pallas streaming-copy kernel."""
    total = x.size
    itemsize = jnp.dtype(x.dtype).itemsize
    target = target_block_bytes or _default_target_block_bytes()

    # ---- choose a 2D lane-dense view (contiguous reshape: metadata only) ----
    lane = _pick_lane_width(total)
    if lane is not None:
        cols = lane                                  # multiple of 128 -> dense vst
    elif x.ndim >= 2:
        cols = total // x.shape[0]                   # full trailing extent (valid)
    else:
        cols = total                                 # single row (valid: full dim)
    rows = total // cols
    x2d = x.reshape(rows, cols)

    # ---- choose the row-block size ----
    per_row_bytes = cols * itemsize
    max_rows_by_target = max(1, target // per_row_bytes)
    if max_rows_by_target >= rows:
        block_rows = rows                            # single step, equals full dim
    elif rows >= 8:
        block_rows = max(8, (max_rows_by_target // 8) * 8)   # multiple of 8
    else:
        block_rows = rows
    block_rows = min(block_rows, rows)

    grid = (pl.cdiv(rows, block_rows),)
    block_shape = (block_rows, cols)
    index_map = lambda i: (i, 0)

    # Double-buffered in + out (~4x block) plus headroom; floor at the common
    # scoped default, cap at v7x's physical 64 MiB per TC.
    block_bytes = block_rows * cols * itemsize
    vmem_limit = int(min(max(16 << 20, (9 * block_bytes) // 2 + (1 << 20)), 64 << 20))

    extra_kwargs = {}
    if donate:
        # Only alias when the caller actually donates x; otherwise XLA would
        # insert a defensive full copy (2x HBM traffic).
        extra_kwargs["input_output_aliases"] = {0: 0}

    out2d = pl.pallas_call(
        _copy_kernel,
        out_shape=jax.ShapeDtypeStruct((rows, cols), x.dtype),
        grid=grid,
        in_specs=[pl.BlockSpec(block_shape, index_map)],
        out_specs=pl.BlockSpec(block_shape, index_map),
        compiler_params=pltpu.CompilerParams(
            dimension_semantics=("parallel",),
            vmem_limit_bytes=vmem_limit,
        ),
        **extra_kwargs,
    )(x2d)

    return out2d.reshape(x.shape)


def identity_forward(
    x: jax.Array,
    *,
    materialize: bool = False,
    donate: bool = False,
    target_block_bytes: int | None = None,
) -> jax.Array:
    """Pallas implementation of IdentityLayer.forward.

    By default this matches PyTorch semantics exactly (returns x, zero cost).
    With materialize=True it returns a physically fresh copy produced by a
    lane-dense Pallas streaming-copy kernel running at HBM roofline.
    """
    if not materialize:
        return x                      # true identity: 0 bytes of HBM traffic
    if x.size == 0:
        return x                      # nothing to copy
    return _materialized_copy(x, donate=donate, target_block_bytes=target_block_bytes)


if __name__ == "__main__":
    key = jax.random.PRNGKey(0)
    k0, k1, k2 = jax.random.split(key, 3)

    # Primary NCHW-style input consistent with a typical conv-net tensor.
    x = jax.random.normal(k0, (2, 4, 16, 16), dtype=jnp.float32)

    # 1) Default path: true identity (PyTorch semantics), no kernel launch.
    y_fast = identity_forward(x)
    assert y_fast.shape == x.shape and y_fast.dtype == x.dtype
    assert bool(jnp.array_equal(y_fast, x))

    # 2) Kernel path: lane-dense streaming copy (size divisible by 128).
    y = jax.block_until_ready(identity_forward(x, materialize=True))
    assert y.shape == x.shape and y.dtype == x.dtype
    assert bool(jnp.array_equal(y, x)), "identity kernel output mismatch"

    # 3) Odd-sized tensor (size not divisible by 128) -> exercises fallback tiling.
    x_odd = jax.random.normal(k1, (3, 5, 7), dtype=jnp.float32)
    y_odd = jax.block_until_ready(identity_forward(x_odd, materialize=True))
    assert bool(jnp.array_equal(y_odd, x_odd)), "fallback path mismatch"

    # 4) Multi-step grid with a partial trailing block (forced small block size).
    x_big = jax.random.normal(k2, (25, 8, 32, 32), dtype=jnp.float32)
    y_big = jax.block_until_ready(
        identity_forward(x_big, materialize=True, target_block_bytes=64 * 1024)
    )
    assert bool(jnp.array_equal(y_big, x_big)), "tiled path mismatch"

    print("KERNEL_OK")
</pallas_src>

<mosaic_0001>
module attributes {stable_mosaic.version = 11 : i64} {
  func.func @_copy_kernel(%arg0: i32, %arg1: memref<2x1024xf32, #tpu.memory_space<vmem>>, %arg2: memref<2x1024xf32, #tpu.memory_space<vmem>>) attributes {dimension_semantics = [#tpu.dimension_semantics<parallel>], iteration_bounds = array<i64: 1>, scalar_prefetch = 0 : i64, scratch_operands = 0 : i64, tpu.core_type = #tpu.core_type<tc>, window_params = [{transform_indices = @transform_0, window_bounds = array<i64: 2, 1024>}, {transform_indices = @transform_1, window_bounds = array<i64: 2, 1024>}]} {
    %c0 = arith.constant 0 : index
    %c0_0 = arith.constant 0 : index
    %0 = vector.load %arg1[%c0, %c0_0] : memref<2x1024xf32, #tpu.memory_space<vmem>>, vector<2x1024xf32>
    %c0_1 = arith.constant 0 : index
    %c0_2 = arith.constant 0 : index
    %1 = vector.load %arg2[%c0_1, %c0_2] : memref<2x1024xf32, #tpu.memory_space<vmem>>, vector<2x1024xf32>
    tpu.vector_store %arg2[%c0_1, %c0_2], %0 {strides = array<i32>} : memref<2x1024xf32, #tpu.memory_space<vmem>>, vector<2x1024xf32>,
    return
  }
  func.func @transform_0(%arg0: i32) -> (i32, i32) {
    %c0_i32 = arith.constant 0 : i32
    %c0_i32_0 = arith.constant 0 : i32
    return %arg0, %c0_i32 : i32, i32
  }
  func.func @transform_1(%arg0: i32) -> (i32, i32) {
    %c0_i32 = arith.constant 0 : i32
    %c0_i32_0 = arith.constant 0 : i32
    return %arg0, %c0_i32 : i32, i32
  }
}

</mosaic_0001>

<llo_original>
// kernel: tpu_custom_call.1
$region0: #{tpu_custom_call.1}
  #allocation0 [shape = 'u32[]', space=smem, size = 0x4, offset = 0x4, fixed_abs, tag = 'smem constant byte address 0x4 - core index']
  #allocation1 [shape = 'u32[144,128]{1,0:T(1,128)}', space=vmem, size = 0x12000, scoped, tag = 'internal scratch']
  %s0 = inlined_call_operand.hbm [shape: f32[2,1024], index: 0, kind: input, shape index: {}]
  %s1 = inlined_call_operand.hbm [shape: f32[2,1024], index: 1, kind: output, shape index: {}]
  %s2 = sld [smem:[#allocation0]]
  $region18: #{tpu_custom_call.1} parent=0
    _
  %s4 = ssub.s32 1, %s2
  %s5 = scalar_select 0, %s4, %s2
  $region1: #{tpu_custom_call.1} parent=0
    #allocation2 [shape = 'u8[8192]{0}', space=vmem, size = 0x2000, scoped, tag = 'input window, operand 0, single buffered']
    #allocation3 [shape = 's32[1]{0}', space=sflag, size = 0x4, scoped, tag = 'scoped memory for tpu_custom_call.1']
    #allocation4 [shape = 's32[1]{0}', space=sflag, size = 0x4, scoped, tag = 'scoped memory for tpu_custom_call.1']
    #allocation5 [shape = 'u8[8192]{0}', space=vmem, size = 0x2000, scoped, tag = 'output window, operand 0, single buffered']
    %6 = vsyncpa [#allocation3], 0
    %7 = vsyncpa [#allocation4], 0
    // Predicated region
    $region2: #{tpu_custom_call.1} parent=1 // pred_check
      _
    $region3: #{tpu_custom_call.1} parent=1 // pred_check_branch
      %9 = sbr.rel (0) target = $region5
    $region4: #{tpu_custom_call.1} parent=1 // pred_region
      %s11 = ssub.s32 256, 256
      %12 = vsyncadd [#allocation3], %s11
      %s14 = sshll.u32 [#allocation2], 4
      %s15 = int_to_ptr.vmem [resolvable:$true] %s14
      %17 = dma.hbm_to_vmem [thread:$0]  %s0, 256, %s15, [#allocation3]
    $region5: #{tpu_custom_call.1} parent=1 // pred_fallthru
      _
    // Predicated region
    $region6: #{tpu_custom_call.1} parent=1 // pred_check
      _
    $region7: #{tpu_custom_call.1} parent=1 // pred_check_branch
      %19 = sbr.rel (0) target = $region9
    $region8: #{tpu_custom_call.1} parent=1 // pred_region
      %20 = dma.done [#allocation3], 256
    $region9: #{tpu_custom_call.1} parent=1 // pred_fallthru
      _
    %v21 = vld [vmem:[#allocation2] sm:$0xff]
    %v22 = vld [vmem:[#allocation2 + $0x8] sm:$0xff]
    %23 = vst [vmem:[#allocation5] sm:$0xff] %v21
    %24 = vst [vmem:[#allocation5 + $0x8] sm:$0xff] %v22
    // Predicated region
    $region10: #{tpu_custom_call.1} parent=1 // pred_check
      _
    $region11: #{tpu_custom_call.1} parent=1 // pred_check_branch
      %26 = sbr.rel (0) target = $region13
    $region12: #{tpu_custom_call.1} parent=1 // pred_region
      %s28 = ssub.s32 256, 256
      %29 = vsyncadd [#allocation4], %s28
      %s31 = sshll.u32 [#allocation5], 4
      %s32 = int_to_ptr.vmem [resolvable:$true] %s31
      %34 = dma.vmem_to_hbm [thread:$0]  %s32, 256, %s1, [#allocation4]
    $region13: #{tpu_custom_call.1} parent=1 // pred_fallthru
      _
    // Predicated region
    $region14: #{tpu_custom_call.1} parent=1 // pred_check
      _
    $region15: #{tpu_custom_call.1} parent=1 // pred_check_branch
      %36 = sbr.rel (0) target = $region17
    $region16: #{tpu_custom_call.1} parent=1 // pred_region
      %37 = dma.done [#allocation4], 256
    $region17: #{tpu_custom_call.1} parent=1 // pred_fallthru
      _
    %38 = vsyncpa [#allocation3], 1
    %39 = vsyncpa [#allocation4], 1

</llo_original>
